<compile_context>
chip_gen: v7x
topology: tpu7x:2x2x1
jax: 0.10.0
libtpu: 0.0.40
codegen_flags: <defaults>
</compile_context>

<pallas_src>
import functools
import math

import jax
import jax.numpy as jnp
from jax.experimental import pallas as pl
from jax.experimental.pallas import tpu as pltpu

LANES = 128


def _chip_defaults():
    """Generation-specific (max streaming tile rows, core-group count)."""
    kind = ""
    try:
        kind = jax.devices()[0].device_kind.lower()
    except Exception:
        pass
    if "v7" in kind or "tpu7" in kind:
        # 3.2 TB/s HBM: 4 MiB/operand blocks amortize the ~0.35us step cost.
        # 3 inputs x 2 bufs x 4 MiB = 24 MiB < 32 MiB default scoped VMEM.
        return 8192, 2
    if "v6" in kind:
        return 8192, 1
    if "v5p" in kind or "v4" in kind:
        return 4096, 2
    if "v5" in kind:          # v5e / v5 lite: 16 MiB default scoped VMEM
        return 4096, 1
    return 2048, 1            # unknown chip: conservative


def _wbce_kernel(x_ref, t_ref, w_ref, o_ref, acc_ref, *,
                 valid_rows, steps_per_core, tile_rows, acc_rows, nblk,
                 need_mask):
    c = pl.program_id(0)   # core-group index ("parallel")
    j = pl.program_id(1)   # streaming / reduction step ("arbitrary")

    @pl.when(j == 0)
    def _():
        acc_ref[...] = jnp.zeros_like(acc_ref)

    x = x_ref[...].astype(jnp.float32)
    t = t_ref[...].astype(jnp.float32)
    w = w_ref[...].astype(jnp.float32)

    # PyTorch clamps each log term at -100 to avoid -inf.
    log_x = jnp.maximum(jnp.log(x), jnp.float32(-100.0))
    log_1mx = jnp.maximum(jnp.log(1.0 - x), jnp.float32(-100.0))
    # Factored form of t*log_x + (1-t)*log_1mx (one fewer VPU multiply).
    loss = -w * (log_1mx + t * (log_x - log_1mx))

    fold = tile_rows // acc_rows

    def accumulate(v):
        if fold > 1:
            # Sublane-aligned split (acc_rows % 8 == 0) -> layout-free reshape;
            # sum over the leading axis is pure VPU adds with fold-deep chains
            # spread over acc_rows/8 independent vreg positions.
            v = v.reshape(fold, acc_rows, LANES).sum(axis=0)
        acc_ref[...] += v

    if need_mask:
        blk = c * steps_per_core + j
        # Only the last real block (possibly ragged) and clamped/duplicated
        # tail blocks can contain invalid rows; everything else accumulates
        # unmasked.
        is_tail = blk >= nblk - 1

        @pl.when(jnp.logical_not(is_tail))
        def _():
            accumulate(loss)

        @pl.when(is_tail)
        def _():
            row0 = blk * tile_rows
            row_ids = row0 + jax.lax.broadcasted_iota(jnp.int32, loss.shape, 0)
            accumulate(jnp.where(row_ids < valid_rows, loss, jnp.float32(0.0)))
    else:
        accumulate(loss)

    @pl.when(j == steps_per_core - 1)
    def _():
        o_ref[...] = acc_ref[...]


def _wbce_main_sum(xm, tm, wm):
    """Sum of per-element weighted BCE loss over a (rows, 128) slab."""
    rows = xm.shape[0]
    tile_rows_max, num_core_groups = _chip_defaults()

    # Block is either the full array (always a legal block shape, any dtype)
    # or the generation-specific max tile (a multiple of 256 -> satisfies the
    # packed-sublane minimum for f32/bf16/int8 alike).
    tile_rows = rows if rows <= tile_rows_max else tile_rows_max
    nblk = pl.cdiv(rows, tile_rows)
    ncores = min(num_core_groups, nblk)
    steps_per_core = pl.cdiv(nblk, ncores)
    need_mask = (ncores * steps_per_core * tile_rows) != rows

    # Small resident accumulator; fold only along sublane-aligned boundaries.
    if tile_rows % 8 == 0:
        acc_rows = math.gcd(tile_rows, 256)
    else:
        acc_rows = tile_rows   # tiny/odd single-block case: no fold

    def in_map(c, j):
        # A core group that runs past the last real block re-reads it; the
        # in-kernel tail mask zeroes its contribution.
        return (jnp.minimum(c * steps_per_core + j, nblk - 1), 0)

    in_spec = pl.BlockSpec((tile_rows, LANES), in_map)
    out_spec = pl.BlockSpec((acc_rows, LANES), lambda c, j: (c, 0))

    n_main = rows * LANES
    in_bytes = sum(a.dtype.itemsize for a in (xm, tm, wm)) * n_main
    out_bytes = ncores * acc_rows * LANES * 4
    cost = pl.CostEstimate(
        flops=7 * n_main,
        transcendentals=2 * n_main,
        bytes_accessed=in_bytes + out_bytes,
    )

    partials = pl.pallas_call(
        functools.partial(
            _wbce_kernel,
            valid_rows=rows,
            steps_per_core=steps_per_core,
            tile_rows=tile_rows,
            acc_rows=acc_rows,
            nblk=nblk,
            need_mask=need_mask,
        ),
        out_shape=jax.ShapeDtypeStruct((ncores * acc_rows, LANES), jnp.float32),
        grid_spec=pltpu.PrefetchScalarGridSpec(
            num_scalar_prefetch=0,
            grid=(ncores, steps_per_core),
            in_specs=[in_spec, in_spec, in_spec],
            out_specs=out_spec,
            scratch_shapes=[pltpu.VMEM((acc_rows, LANES), jnp.float32)],
        ),
        compiler_params=pltpu.CompilerParams(
            dimension_semantics=("parallel", "arbitrary"),
        ),
        cost_estimate=cost,
    )(xm, tm, wm)

    # Tiny epilogue: reduce at most a (512, 128) f32 slab.
    return jnp.sum(partials)


def _bce_terms(x, t, w):
    x = x.astype(jnp.float32)
    t = t.astype(jnp.float32)
    w = w.astype(jnp.float32)
    log_x = jnp.maximum(jnp.log(x), -100.0)
    log_1mx = jnp.maximum(jnp.log(1.0 - x), -100.0)
    return -w * (t * log_x + (1.0 - t) * log_1mx)


def weighted_bce_loss(x, target, weight):
    """Mean-reduced weighted BCE, matching F.binary_cross_entropy(..., weight, 'mean')."""
    assert x.shape == target.shape == weight.shape
    total_n = x.size

    xf = x.reshape(-1)
    tf = target.reshape(-1)
    wf = weight.reshape(-1)

    rows = total_n // LANES
    n_main = rows * LANES
    rem = total_n - n_main

    total = jnp.float32(0.0)
    if rows > 0:
        if rem:
            xm = xf[:n_main].reshape(rows, LANES)
            tm = tf[:n_main].reshape(rows, LANES)
            wm = wf[:n_main].reshape(rows, LANES)
        else:
            xm = xf.reshape(rows, LANES)
            tm = tf.reshape(rows, LANES)
            wm = wf.reshape(rows, LANES)
        total = _wbce_main_sum(xm, tm, wm)

    if rem:
        # <128 leftover elements: plain jnp, folded into the same sum.
        total = total + jnp.sum(_bce_terms(xf[n_main:], tf[n_main:], wf[n_main:]))

    return total / jnp.float32(total_n)


def _reference(x, target, weight):
    log_x = jnp.maximum(jnp.log(x), -100.0)
    log_1mx = jnp.maximum(jnp.log(1.0 - x), -100.0)
    loss = -weight * (target * log_x + (1.0 - target) * log_1mx)
    return jnp.mean(loss)


if __name__ == "__main__":
    key = jax.random.PRNGKey(0)
    k1, k2, k3 = jax.random.split(key, 3)

    B, C, H, W = 2, 4, 16, 16
    # input: probabilities in (0, 1); target: {0, 1}; weight: positive scalars.
    x = jax.nn.sigmoid(jax.random.normal(k1, (B, C, H, W), dtype=jnp.float32))
    target = jax.random.bernoulli(k2, 0.5, (B, C, H, W)).astype(jnp.float32)
    weight = jax.random.uniform(k3, (B, C, H, W), dtype=jnp.float32,
                                minval=0.1, maxval=2.0)

    out = weighted_bce_loss(x, target, weight)
    out = jax.block_until_ready(out)

    ref = _reference(x, target, weight)
    assert jnp.allclose(out, ref, rtol=1e-5, atol=1e-5), (out, ref)
    print("KERNEL_OK")
</pallas_src>

<mosaic_0001>
module attributes {stable_mosaic.version = 11 : i64} {
  func.func @_wbce_kernel(%arg0: i32, %arg1: i32, %arg2: memref<16x128xf32, #tpu.memory_space<vmem>>, %arg3: memref<16x128xf32, #tpu.memory_space<vmem>>, %arg4: memref<16x128xf32, #tpu.memory_space<vmem>>, %arg5: memref<16x128xf32, #tpu.memory_space<vmem>>, %arg6: memref<16x128xf32, #tpu.memory_space<vmem>>) attributes {dimension_semantics = [#tpu.dimension_semantics<parallel>, #tpu.dimension_semantics<arbitrary>], iteration_bounds = array<i64: 1, 1>, scalar_prefetch = 0 : i64, scratch_operands = 1 : i64, tpu.core_type = #tpu.core_type<tc>, window_params = [{transform_indices = @transform_0, window_bounds = array<i64: 16, 128>}, {transform_indices = @transform_1, window_bounds = array<i64: 16, 128>}, {transform_indices = @transform_2, window_bounds = array<i64: 16, 128>}, {transform_indices = @transform_3, window_bounds = array<i64: 16, 128>}]} {
    %c0_i32 = arith.constant 0 : i32
    %0 = arith.cmpi eq, %arg1, %c0_i32 : i32
    %1 = arith.extui %0 : i1 to i32
    %c0_i32_0 = arith.constant 0 : i32
    %2 = arith.cmpi ne, %1, %c0_i32_0 : i32
    scf.if %2 {
      %cst_15 = arith.constant 0.000000e+00 : f32
      %26 = vector.broadcast %cst_15 : f32 to vector<16x128xf32>
      %c0_16 = arith.constant 0 : index
      %c0_17 = arith.constant 0 : index
      %27 = vector.load %arg6[%c0_16, %c0_17] : memref<16x128xf32, #tpu.memory_space<vmem>>, vector<16x128xf32>
      tpu.vector_store %arg6[%c0_16, %c0_17], %26 {strides = array<i32>} : memref<16x128xf32, #tpu.memory_space<vmem>>, vector<16x128xf32>,
    } else {
    }
    %c0 = arith.constant 0 : index
    %c0_1 = arith.constant 0 : index
    %3 = vector.load %arg2[%c0, %c0_1] : memref<16x128xf32, #tpu.memory_space<vmem>>, vector<16x128xf32>
    %c0_2 = arith.constant 0 : index
    %c0_3 = arith.constant 0 : index
    %4 = vector.load %arg3[%c0_2, %c0_3] : memref<16x128xf32, #tpu.memory_space<vmem>>, vector<16x128xf32>
    %c0_4 = arith.constant 0 : index
    %c0_5 = arith.constant 0 : index
    %5 = vector.load %arg4[%c0_4, %c0_5] : memref<16x128xf32, #tpu.memory_space<vmem>>, vector<16x128xf32>
    %6 = math.log %3 : vector<16x128xf32>
    %cst = arith.constant -1.000000e+02 : f32
    %7 = vector.broadcast %cst : f32 to vector<16x128xf32>
    %8 = arith.maximumf %6, %7 : vector<16x128xf32>
    %cst_6 = arith.constant 1.000000e+00 : f32
    %9 = vector.broadcast %cst_6 : f32 to vector<16x128xf32>
    %10 = arith.subf %9, %3 : vector<16x128xf32>
    %11 = math.log %10 : vector<16x128xf32>
    %cst_7 = arith.constant -1.000000e+02 : f32
    %12 = vector.broadcast %cst_7 : f32 to vector<16x128xf32>
    %13 = arith.maximumf %11, %12 : vector<16x128xf32>
    %cst_8 = arith.constant 0.000000e+00 : f32
    %14 = vector.broadcast %cst_8 : f32 to vector<16x128xf32>
    %15 = arith.subf %14, %5 : vector<16x128xf32>
    %16 = arith.subf %8, %13 : vector<16x128xf32>
    %17 = arith.mulf %4, %16 : vector<16x128xf32>
    %18 = arith.addf %13, %17 : vector<16x128xf32>
    %19 = arith.mulf %15, %18 : vector<16x128xf32>
    %c0_9 = arith.constant 0 : index
    %c0_10 = arith.constant 0 : index
    %20 = vector.load %arg6[%c0_9, %c0_10] : memref<16x128xf32, #tpu.memory_space<vmem>>, vector<16x128xf32>
    %21 = arith.addf %20, %19 : vector<16x128xf32>
    %c0_11 = arith.constant 0 : index
    %c0_12 = arith.constant 0 : index
    %22 = vector.load %arg6[%c0_11, %c0_12] : memref<16x128xf32, #tpu.memory_space<vmem>>, vector<16x128xf32>
    tpu.vector_store %arg6[%c0_11, %c0_12], %21 {strides = array<i32>} : memref<16x128xf32, #tpu.memory_space<vmem>>, vector<16x128xf32>,
    %c0_i32_13 = arith.constant 0 : i32
    %23 = arith.cmpi eq, %arg1, %c0_i32_13 : i32
    %24 = arith.extui %23 : i1 to i32
    %c0_i32_14 = arith.constant 0 : i32
    %25 = arith.cmpi ne, %24, %c0_i32_14 : i32
    scf.if %25 {
      %c0_15 = arith.constant 0 : index
      %c0_16 = arith.constant 0 : index
      %26 = vector.load %arg6[%c0_15, %c0_16] : memref<16x128xf32, #tpu.memory_space<vmem>>, vector<16x128xf32>
      %c0_17 = arith.constant 0 : index
      %c0_18 = arith.constant 0 : index
      %27 = vector.load %arg5[%c0_17, %c0_18] : memref<16x128xf32, #tpu.memory_space<vmem>>, vector<16x128xf32>
      tpu.vector_store %arg5[%c0_17, %c0_18], %26 {strides = array<i32>} : memref<16x128xf32, #tpu.memory_space<vmem>>, vector<16x128xf32>,
    } else {
    }
    return
  }
  func.func @transform_0(%arg0: i32, %arg1: i32) -> (i32, i32) {
    %c1_i32 = arith.constant 1 : i32
    %0 = arith.muli %arg0, %c1_i32 : i32
    %1 = arith.addi %0, %arg1 : i32
    %c0_i32 = arith.constant 0 : i32
    %2 = arith.minsi %1, %c0_i32 : i32
    %c0_i32_0 = arith.constant 0 : i32
    %c0_i32_1 = arith.constant 0 : i32
    return %2, %c0_i32_0 : i32, i32
  }
  func.func @transform_1(%arg0: i32, %arg1: i32) -> (i32, i32) {
    %c1_i32 = arith.constant 1 : i32
    %0 = arith.muli %arg0, %c1_i32 : i32
    %1 = arith.addi %0, %arg1 : i32
    %c0_i32 = arith.constant 0 : i32
    %2 = arith.minsi %1, %c0_i32 : i32
    %c0_i32_0 = arith.constant 0 : i32
    %c0_i32_1 = arith.constant 0 : i32
    return %2, %c0_i32_0 : i32, i32
  }
  func.func @transform_2(%arg0: i32, %arg1: i32) -> (i32, i32) {
    %c1_i32 = arith.constant 1 : i32
    %0 = arith.muli %arg0, %c1_i32 : i32
    %1 = arith.addi %0, %arg1 : i32
    %c0_i32 = arith.constant 0 : i32
    %2 = arith.minsi %1, %c0_i32 : i32
    %c0_i32_0 = arith.constant 0 : i32
    %c0_i32_1 = arith.constant 0 : i32
    return %2, %c0_i32_0 : i32, i32
  }
  func.func @transform_3(%arg0: i32, %arg1: i32) -> (i32, i32) {
    %c0_i32 = arith.constant 0 : i32
    %c0_i32_0 = arith.constant 0 : i32
    return %arg0, %c0_i32 : i32, i32
  }
}

</mosaic_0001>

<llo_original>
// kernel: tpu_custom_call.1
$region0: #{tpu_custom_call.1}
  #allocation0 [shape = 'u32[]', space=smem, size = 0x4, offset = 0x4, fixed_abs, tag = 'smem constant byte address 0x4 - core index']
  #allocation1 [shape = 'u32[144,128]{1,0:T(1,128)}', space=vmem, size = 0x12000, scoped, tag = 'internal scratch']
  #allocation2 [shape = 'f32[16,128]{1,0:T(8,128)}', space=vmem, size = 0x2000, scoped, tag = 'scratch operand']
  %s0 = inlined_call_operand.hbm [shape: f32[16,128], index: 0, kind: input, shape index: {}]
  %s1 = inlined_call_operand.hbm [shape: f32[16,128], index: 1, kind: input, shape index: {}]
  %s2 = inlined_call_operand.hbm [shape: f32[16,128], index: 2, kind: input, shape index: {}]
  %s3 = inlined_call_operand.hbm [shape: f32[16,128], index: 3, kind: output, shape index: {}]
  %s4 = sld [smem:[#allocation0]]
  $region42: #{tpu_custom_call.1} parent=0
    _
  %s6 = ssub.s32 1, %s4
  %s7 = scalar_select 0, %s6, %s4
  $region1: #{tpu_custom_call.1} parent=0
    #allocation3 [shape = 'u8[8192]{0}', space=vmem, size = 0x2000, scoped, tag = 'input window, operand 0, single buffered']
    #allocation4 [shape = 's32[1]{0}', space=sflag, size = 0x4, scoped, tag = 'scoped memory for tpu_custom_call.1']
    #allocation5 [shape = 's32[1]{0}', space=sflag, size = 0x4, scoped, tag = 'scoped memory for tpu_custom_call.1']
    #allocation6 [shape = 'u8[8192]{0}', space=vmem, size = 0x2000, scoped, tag = 'input window, operand 1, single buffered']
    #allocation7 [shape = 's32[1]{0}', space=sflag, size = 0x4, scoped, tag = 'scoped memory for tpu_custom_call.1']
    #allocation8 [shape = 'u8[8192]{0}', space=vmem, size = 0x2000, scoped, tag = 'input window, operand 2, single buffered']
    #allocation9 [shape = 'u8[8192]{0}', space=vmem, size = 0x2000, scoped, tag = 'output window, operand 0, single buffered']
    %8 = vsyncpa [#allocation4], 0
    %9 = vsyncpa [#allocation7], 0
    %10 = vsyncpa [#allocation5], 0
    // Predicated region
    $region2: #{tpu_custom_call.1} parent=1 // pred_check
      _
    $region3: #{tpu_custom_call.1} parent=1 // pred_check_branch
      %12 = sbr.rel (0) target = $region5
    $region4: #{tpu_custom_call.1} parent=1 // pred_region
      %s13 = sadd.s32 0, 0
      %p14 = scmp.lt.s32.totalorder %s13, 0
      %s15 = scalar_select %p14, %s13, 0
      %s16 = smul.u32 2, %s15
      %s18 = ssub.s32 256, 256
      %19 = vsyncadd [#allocation4], %s18
      %s20 = smul.addr %s16, 128
      %s21 = scalar_lea.hbm %s0, %s20
      %s22 = sshll.u32 [#allocation3], 4
      %s23 = int_to_ptr.vmem [resolvable:$true] %s22
      %28 = dma.hbm_to_vmem [thread:$0]  %s21, 256, %s23, [#allocation4], 128, 128, 8
    $region5: #{tpu_custom_call.1} parent=1 // pred_fallthru
      _
    // Predicated region
    $region6: #{tpu_custom_call.1} parent=1 // pred_check
      _
    $region7: #{tpu_custom_call.1} parent=1 // pred_check_branch
      %30 = sbr.rel (0) target = $region9
    $region8: #{tpu_custom_call.1} parent=1 // pred_region
      %s31 = sadd.s32 0, 0
      %p32 = scmp.lt.s32.totalorder %s31, 0
      %s33 = scalar_select %p32, %s31, 0
      %s34 = smul.u32 2, %s33
      %s36 = ssub.s32 256, 256
      %37 = vsyncadd [#allocation7], %s36
      %s38 = smul.addr %s34, 128
      %s39 = scalar_lea.hbm %s1, %s38
      %s40 = sshll.u32 [#allocation6], 4
      %s41 = int_to_ptr.vmem [resolvable:$true] %s40
      %46 = dma.hbm_to_vmem [thread:$0]  %s39, 256, %s41, [#allocation7], 128, 128, 8
    $region9: #{tpu_custom_call.1} parent=1 // pred_fallthru
      _
    // Predicated region
    $region10: #{tpu_custom_call.1} parent=1 // pred_check
      _
    $region11: #{tpu_custom_call.1} parent=1 // pred_check_branch
      %48 = sbr.rel (0) target = $region13
    $region12: #{tpu_custom_call.1} parent=1 // pred_region
      %s49 = sadd.s32 0, 0
      %p50 = scmp.lt.s32.totalorder %s49, 0
      %s51 = scalar_select %p50, %s49, 0
      %s52 = smul.u32 2, %s51
      %s54 = ssub.s32 256, 256
      %55 = vsyncadd [#allocation7], %s54
      %s56 = smul.addr %s52, 128
      %s57 = scalar_lea.hbm %s2, %s56
      %s58 = sshll.u32 [#allocation8], 4
      %s59 = int_to_ptr.vmem [resolvable:$true] %s58
      %64 = dma.hbm_to_vmem [thread:$0]  %s57, 256, %s59, [#allocation7], 128, 128, 8
    $region13: #{tpu_custom_call.1} parent=1 // pred_fallthru
      _
    // Predicated region
    $region14: #{tpu_custom_call.1} parent=1 // pred_check
      _
    $region15: #{tpu_custom_call.1} parent=1 // pred_check_branch
      %66 = sbr.rel (0) target = $region17
    $region16: #{tpu_custom_call.1} parent=1 // pred_region
      %67 = dma.done [#allocation4], 256
    $region17: #{tpu_custom_call.1} parent=1 // pred_fallthru
      _
    // Predicated region
    $region18: #{tpu_custom_call.1} parent=1 // pred_check
      _
    $region19: #{tpu_custom_call.1} parent=1 // pred_check_branch
      %69 = sbr.rel (0) target = $region21
    $region20: #{tpu_custom_call.1} parent=1 // pred_region
      %70 = dma.done [#allocation7], 256
    $region21: #{tpu_custom_call.1} parent=1 // pred_fallthru
      _
    // Predicated region
    $region22: #{tpu_custom_call.1} parent=1 // pred_check
      _
    $region23: #{tpu_custom_call.1} parent=1 // pred_check_branch
      %72 = sbr.rel (0) target = $region25
    $region24: #{tpu_custom_call.1} parent=1 // pred_region
      %73 = dma.done [#allocation7], 256
    $region25: #{tpu_custom_call.1} parent=1 // pred_fallthru
      _
    %s74 = sadd.s32 0, 0
    %p75 = scmp.lt.s32.totalorder %s74, 0
    %s76 = scalar_select %p75, %s74, 0
    %s77 = smul.u32 2, %s76
    %s78 = sadd.s32 0, 0
    %p79 = scmp.lt.s32.totalorder %s78, 0
    %s80 = scalar_select %p79, %s78, 0
    %s81 = smul.u32 2, %s80
    %s82 = sadd.s32 0, 0
    %p83 = scmp.lt.s32.totalorder %s82, 0
    %s84 = scalar_select %p83, %s82, 0
    %s85 = smul.u32 2, %s84
    %p86 = scmp.eq.s32.totalorder 0, 0
    // Predicated region
    $region26: #{tpu_custom_call.1} parent=1 // pred_check
      %p87 = pneg %p86
    $region27: #{tpu_custom_call.1} parent=1 // pred_check_branch
      %89 = sbr.rel (%p87) target = $region29
    $region28: #{tpu_custom_call.1} parent=1 // pred_region
      %90 = vst [vmem:[#allocation2] sm:$0xff] 0.0
      %91 = vst [vmem:[#allocation2 + $0x8] sm:$0xff] 0.0
    $region29: #{tpu_custom_call.1} parent=1 // pred_fallthru
      _
    %v92 = vld [vmem:[#allocation3] sm:$0xff]
    %v93 = vld [vmem:[#allocation3 + $0x8] sm:$0xff]
    %v94 = vld [vmem:[#allocation6] sm:$0xff]
    %v95 = vld [vmem:[#allocation6 + $0x8] sm:$0xff]
    %v96 = vld [vmem:[#allocation8] sm:$0xff]
    %v97 = vld [vmem:[#allocation8 + $0x8] sm:$0xff]
    %v98 = vlog2.pop %v92
    %v99 = vmul.f32 %v98, 0.6931472
    %v100 = vlog2.pop %v93
    %v101 = vmul.f32 %v100, 0.6931472
    %v102 = vmax.f32 %v99, -100.0
    %v103 = vmax.f32 %v101, -100.0
    %v104 = vsub.f32 1.0, %v92
    %v105 = vsub.f32 1.0, %v93
    %v106 = vlog2.pop %v104
    %v107 = vmul.f32 %v106, 0.6931472
    %v108 = vlog2.pop %v105
    %v109 = vmul.f32 %v108, 0.6931472
    %v110 = vmax.f32 %v107, -100.0
    %v111 = vmax.f32 %v109, -100.0
    %v112 = vsub.f32 0.0, %v96
    %v113 = vsub.f32 0.0, %v97
    %v114 = vsub.f32 %v102, %v110
    %v115 = vsub.f32 %v103, %v111
    %v116 = vmul.f32 %v94, %v114
    %v117 = vmul.f32 %v95, %v115
    %v118 = vadd.f32 %v110, %v116
    %v119 = vadd.f32 %v111, %v117
    %v120 = vmul.f32 %v112, %v118
    %v121 = vmul.f32 %v113, %v119
    %v122 = vld [vmem:[#allocation2] sm:$0xff]
    %v123 = vld [vmem:[#allocation2 + $0x8] sm:$0xff]
    %v124 = vadd.f32 %v122, %v120
    %v125 = vadd.f32 %v123, %v121
    %126 = vst [vmem:[#allocation2] sm:$0xff] %v124
    %127 = vst [vmem:[#allocation2 + $0x8] sm:$0xff] %v125
    // Predicated region
    $region30: #{tpu_custom_call.1} parent=1 // pred_check
      %p128 = pneg %p86
    $region31: #{tpu_custom_call.1} parent=1 // pred_check_branch
      %130 = sbr.rel (%p128) target = $region33
    $region32: #{tpu_custom_call.1} parent=1 // pred_region
      %v131 = vld [vmem:[#allocation2] sm:$0xff]
      %v132 = vld [vmem:[#allocation2 + $0x8] sm:$0xff]
      %133 = vst [vmem:[#allocation9] sm:$0xff] %v131
      %134 = vst [vmem:[#allocation9 + $0x8] sm:$0xff] %v132
    $region33: #{tpu_custom_call.1} parent=1 // pred_fallthru
      _
    // Predicated region
    $region34: #{tpu_custom_call.1} parent=1 // pred_check
      _
    $region35: #{tpu_custom_call.1} parent=1 // pred_check_branch
      %136 = sbr.rel (0) target = $region37
    $region36: #{tpu_custom_call.1} parent=1 // pred_region
      %s138 = ssub.s32 256, 256
      %139 = vsyncadd [#allocation5], %s138
      %s140 = sshll.u32 [#allocation9], 4
      %s141 = int_to_ptr.vmem [resolvable:$true] %s140
      %146 = dma.vmem_to_hbm [thread:$0]  %s141, 256, %s3, [#allocation5], 128, 128, 8
    $region37: #{tpu_custom_call.1} parent=1 // pred_fallthru
      _
    // Predicated region
    $region38: #{tpu_custom_call.1} parent=1 // pred_check
      _
    $region39: #{tpu_custom_call.1} parent=1 // pred_check_branch
      %148 = sbr.rel (0) target = $region41
    $region40: #{tpu_custom_call.1} parent=1 // pred_region
      %149 = dma.done [#allocation5], 256
    $region41: #{tpu_custom_call.1} parent=1 // pred_fallthru
      _
    %150 = vsyncpa [#allocation4], 1
    %151 = vsyncpa [#allocation7], 1
    %152 = vsyncpa [#allocation5], 1

</llo_original>
